<compile_context>
chip_gen: v7x
topology: tpu7x:2x2x1
jax: 0.10.0
libtpu: 0.0.40
codegen_flags: <defaults>
</compile_context>

<pallas_src>
import functools

import jax
import jax.numpy as jnp
import numpy as np
from jax.experimental import pallas as pl
from jax.experimental.pallas import tpu as pltpu

LN_EPS = 1e-5


# ----------------------------- Pallas kernel ------------------------------- #

def _projector_kernel(*refs, prenorm, pos_emb, num_eos, eos_offset,
                      extra_eos_step, n_data_tiles):
    """Fused [LayerNorm] + [pos-emb add] + [eos-token writeback].

    Ref order (static flags decide which are present):
        x, [ln_gamma, ln_beta], [pos_emb], [eos_tokens], out
    Grid: (n_steps, B) -- row-tile axis outer, batch inner, so the pos_emb tile
    index only changes when the row tile changes and its re-fetch is skipped
    across the batch.
    """
    it = iter(refs)
    x_ref = next(it)
    g_ref = next(it) if prenorm else None
    b_ref = next(it) if prenorm else None
    p_ref = next(it) if pos_emb else None
    e_ref = next(it) if num_eos else None
    o_ref = next(it)

    in_rows = x_ref.shape[1]
    out_rows = o_ref.shape[1]

    def _f32(v):
        return v if v.dtype == jnp.float32 else v.astype(jnp.float32)

    def data_body():
        x = _f32(x_ref[...])                              # (1, rows, D)
        if prenorm:
            # Numerically stable mean-shifted two-pass LayerNorm; the extra
            # VPU/XLU work is free on this HBM-bandwidth-bound kernel.
            mean = jnp.mean(x, axis=-1, keepdims=True)
            xc = x - mean
            var = jnp.mean(xc * xc, axis=-1, keepdims=True)
            x = xc * jax.lax.rsqrt(var + LN_EPS)
            x = x * _f32(g_ref[...]) + _f32(b_ref[...])
        if pos_emb:
            x = x + _f32(p_ref[...])
        y = x.astype(o_ref.dtype)
        if in_rows == out_rows:
            o_ref[...] = y
        else:
            o_ref[:, 0:in_rows, :] = y

    def eos_body():
        o_ref[:, eos_offset:eos_offset + num_eos, :] = (
            e_ref[...].astype(o_ref.dtype))

    if extra_eos_step:
        t = pl.program_id(0)

        @pl.when(t < n_data_tiles)
        def _():
            data_body()

        @pl.when(t == n_data_tiles)
        def _():
            eos_body()
    else:
        data_body()
        if num_eos:
            if n_data_tiles == 1:
                eos_body()
            else:
                @pl.when(pl.program_id(0) == n_data_tiles - 1)
                def _():
                    eos_body()


# ------------------------------ tiling helpers ----------------------------- #

def _vmem_capacity_bytes():
    """Physical VMEM per TensorCore (v5e/v6e: 128 MiB, v7x: 64 MiB)."""
    try:
        return int(pltpu.get_tpu_info().vmem_capacity_bytes)
    except Exception:
        return 64 * 1024 * 1024   # conservative fallback (v7x per-TC)


def _choose_row_tile(L, D, itemsize, cap_limit):
    """Largest sequence tile (multiple of 8, or full L) whose single-stream
    block targets ~cap_limit/12 bytes so ~6-7 double-buffered blocks
    (x, pos_emb, out) plus headroom fit the scoped-VMEM budget:
    ~8 MiB blocks on 128 MiB parts (v5e/v6e), ~4 MiB on 64 MiB (v7x)."""
    target = max(512 * 1024, min(8 * 1024 * 1024, cap_limit // 12))
    max_rows = max(8, (target // max(1, D * itemsize)) // 8 * 8)
    return L if L <= max_rows else max_rows


# ------------------------------ JAX wrapper -------------------------------- #

def make_projector_params(key, *, encoder_hidden_size, text_hidden_size,
                          n_modality_embs, num_eos_tokens, pos_emb, prenorm,
                          initializer_range=1.0, dtype=jnp.float32):
    """Deterministic parameter init mirroring Projector.__init__ shapes.
    Params are stored in `dtype` (e.g. the activation dtype) to halve their HBM
    traffic on a bandwidth-bound kernel; the kernel upcasts to f32 internally."""
    k_pos, k_eos = jax.random.split(key, 2)
    params = {}
    if prenorm:
        # torch.nn.LayerNorm default init: weight=1, bias=0
        params["ln_gamma"] = jnp.ones((1, 1, encoder_hidden_size), dtype)
        params["ln_beta"] = jnp.zeros((1, 1, encoder_hidden_size), dtype)
    if pos_emb:
        # trunc_normal_(std=0.02)
        params["pos_emb"] = (0.02 * jax.random.truncated_normal(
            k_pos, -2.0, 2.0, (1, n_modality_embs, encoder_hidden_size),
            jnp.float32)).astype(dtype)
    if num_eos_tokens:
        # trunc_normal_(std=initializer_range)
        params["eos_tokens"] = (initializer_range * jax.random.truncated_normal(
            k_eos, -2.0, 2.0, (1, num_eos_tokens, text_hidden_size),
            jnp.float32)).astype(dtype)
    return params


def projector_forward(x, params, *, prenorm, pos_emb, num_eos_tokens,
                      row_tile=None):
    """x: (B, L, D).  Returns (B, L [+ num_eos_tokens], D).
    row_tile: optional override of the sequence tile (must be a multiple of 8
    when < L); used for testing the tiled paths at small shapes."""
    B, L, D = x.shape
    num_eos = int(num_eos_tokens) if num_eos_tokens else 0

    if not (prenorm or pos_emb or num_eos):
        return x

    if pos_emb:
        assert params["pos_emb"].shape[1] == L, (
            "pos_emb length must equal the number of input tokens")

    itemsize = x.dtype.itemsize
    cap_limit = (_vmem_capacity_bytes() * 3) // 4    # never request > 3/4 of VMEM
    TL = row_tile if row_tile is not None else _choose_row_tile(
        L, D, itemsize, cap_limit)
    TL = min(TL, L)
    n_data_tiles = (L + TL - 1) // TL                # ragged last tile allowed
    rem = L % TL

    # How the eos tokens get written.
    eos_fused = False        # eos rows written by the kernel itself
    extra_eos_step = False   # eos rows get their own (final) grid step
    eos_offset = 0           # eos row offset inside its output block
    if num_eos and params["eos_tokens"].shape[-1] == D:
        if n_data_tiles == 1:
            eos_fused, eos_offset = True, L          # same step as the data rows
        elif rem == 0:
            eos_fused, extra_eos_step = True, True   # eos starts on a block edge
        elif rem + num_eos <= TL:
            eos_fused, eos_offset = True, rem        # inside last ragged block
        # else: eos would straddle a block boundary -> fall back to concat.

    L_out = L + (num_eos if eos_fused else 0)
    n_steps = n_data_tiles + (1 if extra_eos_step else 0)
    out_rows = L_out if (n_data_tiles == 1 and not extra_eos_step) else TL

    if extra_eos_step:
        last = n_data_tiles - 1
        x_map = lambda t, b: (b, jnp.minimum(t, last), 0)
        p_map = lambda t, b: (0, jnp.minimum(t, last), 0)
    else:
        x_map = lambda t, b: (b, t, 0)
        p_map = lambda t, b: (0, t, 0)

    in_specs = [pl.BlockSpec((1, TL, D), x_map)]
    args = [x]
    if prenorm:
        const_map = lambda t, b: (0, 0, 0)
        in_specs += [pl.BlockSpec((1, 1, D), const_map),
                     pl.BlockSpec((1, 1, D), const_map)]
        args += [params["ln_gamma"], params["ln_beta"]]
    if pos_emb:
        in_specs.append(pl.BlockSpec((1, TL, D), p_map))
        args.append(params["pos_emb"])
    if eos_fused:
        in_specs.append(pl.BlockSpec((1, num_eos, D), lambda t, b: (0, 0, 0)))
        args.append(params["eos_tokens"])

    out_spec = pl.BlockSpec((1, out_rows, D), lambda t, b: (b, t, 0))

    kernel = functools.partial(
        _projector_kernel,
        prenorm=bool(prenorm), pos_emb=bool(pos_emb),
        num_eos=(num_eos if eos_fused else 0),
        eos_offset=eos_offset, extra_eos_step=extra_eos_step,
        n_data_tiles=n_data_tiles)

    block_bytes = max(TL, out_rows) * D * itemsize
    vmem_limit = int(min(cap_limit,
                         max(16 * 1024 * 1024,
                             8 * block_bytes + 2 * 1024 * 1024)))

    y = pl.pallas_call(
        kernel,
        out_shape=jax.ShapeDtypeStruct((B, L_out, D), x.dtype),
        grid_spec=pltpu.PrefetchScalarGridSpec(
            num_scalar_prefetch=0,
            grid=(n_steps, B),          # row tiles outer, batch inner:
            in_specs=in_specs,          #   pos_emb re-fetch skipped across B
            out_specs=out_spec,
        ),
        compiler_params=pltpu.CompilerParams(
            dimension_semantics=("parallel", "parallel"),
            vmem_limit_bytes=vmem_limit,
        ),
    )(*args)

    # TODO(synk): Projector._forward / build_net are abstract (NotImplementedError)
    # in the provided module; the c-abstractor subclass is not given, so _forward
    # is treated as identity here.

    if num_eos and not eos_fused:
        # Rare fallback (eos rows would straddle a tile boundary): plain concat.
        eos = jnp.broadcast_to(params["eos_tokens"].astype(y.dtype),
                               (B, num_eos, params["eos_tokens"].shape[-1]))
        y = jnp.concatenate([y, eos], axis=1)
    return y


# ------------------------------ reference ---------------------------------- #

def projector_forward_ref(x, params, *, prenorm, pos_emb, num_eos_tokens):
    y = x.astype(jnp.float32)
    if prenorm:
        mean = jnp.mean(y, axis=-1, keepdims=True)
        var = jnp.mean((y - mean) ** 2, axis=-1, keepdims=True)
        y = (y - mean) * jax.lax.rsqrt(var + LN_EPS)
        y = (y * params["ln_gamma"].astype(jnp.float32)
             + params["ln_beta"].astype(jnp.float32))
    if pos_emb:
        y = y + params["pos_emb"].astype(jnp.float32)
    y = y.astype(x.dtype)
    if num_eos_tokens:
        B = y.shape[0]
        eos = jnp.broadcast_to(params["eos_tokens"].astype(x.dtype),
                               (B, num_eos_tokens,
                                params["eos_tokens"].shape[-1]))
        y = jnp.concatenate([y, eos], axis=1)
    return y


# --------------------------------- main ------------------------------------ #

if __name__ == "__main__":
    key = jax.random.PRNGKey(0)

    def run_case(name, *, B, L, D, num_eos, use_pos, use_norm, row_tile, k):
        kx, kp = jax.random.split(k)
        x = jax.random.normal(kx, (B, L, D), jnp.float32)
        params = make_projector_params(
            kp,
            encoder_hidden_size=D, text_hidden_size=D, n_modality_embs=L,
            num_eos_tokens=num_eos, pos_emb=use_pos, prenorm=use_norm,
            initializer_range=1.0, dtype=x.dtype)
        out = projector_forward(
            x, params, prenorm=use_norm, pos_emb=use_pos,
            num_eos_tokens=num_eos, row_tile=row_tile)
        out = jax.block_until_ready(out)
        ref = projector_forward_ref(
            x, params, prenorm=use_norm, pos_emb=use_pos,
            num_eos_tokens=num_eos)
        ref = jax.block_until_ready(ref)
        assert out.shape == (B, L + num_eos, D), (name, out.shape)
        np.testing.assert_allclose(np.asarray(out), np.asarray(ref),
                                   rtol=1e-5, atol=1e-5, err_msg=name)

    k1, k2, k3 = jax.random.split(key, 3)

    # Common projector case: whole sequence + eos written in one step per batch.
    run_case("single_tile", B=2, L=8, D=128, num_eos=2,
             use_pos=True, use_norm=True, row_tile=None, k=k1)
    # Tiled path, ragged last tile (L % TL != 0), eos fused into last data block.
    run_case("ragged_fused_eos", B=2, L=20, D=128, num_eos=2,
             use_pos=True, use_norm=True, row_tile=8, k=k2)
    # Tiled path, L % TL == 0 -> eos rows written in one extra grid step.
    run_case("extra_eos_step", B=2, L=16, D=128, num_eos=2,
             use_pos=True, use_norm=True, row_tile=8, k=k3)

    print("KERNEL_OK")
</pallas_src>

<mosaic_0001>
module attributes {stable_mosaic.version = 11 : i64} {
  func.func @_projector_kernel(%arg0: i32, %arg1: i32, %arg2: memref<1x8x128xf32, #tpu.memory_space<vmem>>, %arg3: memref<1x1x128xf32, #tpu.memory_space<vmem>>, %arg4: memref<1x1x128xf32, #tpu.memory_space<vmem>>, %arg5: memref<1x8x128xf32, #tpu.memory_space<vmem>>, %arg6: memref<1x2x128xf32, #tpu.memory_space<vmem>>, %arg7: memref<1x10x128xf32, #tpu.memory_space<vmem>>) attributes {dimension_semantics = [#tpu.dimension_semantics<parallel>, #tpu.dimension_semantics<parallel>], iteration_bounds = array<i64: 1, 2>, scalar_prefetch = 0 : i64, scratch_operands = 0 : i64, tpu.core_type = #tpu.core_type<tc>, window_params = [{transform_indices = @transform_0, window_bounds = array<i64: 1, 8, 128>}, {pipeline_mode = #tpu.pipeline_mode<synchronous>, transform_indices = @transform_1, window_bounds = array<i64: 1, 1, 128>}, {pipeline_mode = #tpu.pipeline_mode<synchronous>, transform_indices = @transform_2, window_bounds = array<i64: 1, 1, 128>}, {transform_indices = @transform_3, window_bounds = array<i64: 1, 8, 128>}, {pipeline_mode = #tpu.pipeline_mode<synchronous>, transform_indices = @transform_4, window_bounds = array<i64: 1, 2, 128>}, {transform_indices = @transform_5, window_bounds = array<i64: 1, 10, 128>}]} {
    %c0 = arith.constant 0 : index
    %c0_0 = arith.constant 0 : index
    %c0_1 = arith.constant 0 : index
    %0 = vector.load %arg2[%c0, %c0_0, %c0_1] : memref<1x8x128xf32, #tpu.memory_space<vmem>>, vector<1x8x128xf32>
    %cst = arith.constant dense<0.000000e+00> : vector<1x8xf32>
    %1 = vector.multi_reduction <add>, %0, %cst [2] : vector<1x8x128xf32> to vector<1x8xf32>
    %2 = vector.shape_cast %1 : vector<1x8xf32> to vector<1x8x1xf32>
    %cst_2 = arith.constant 1.280000e+02 : f32
    %3 = vector.broadcast %cst_2 : f32 to vector<1x8x1xf32>
    %4 = arith.divf %2, %3 : vector<1x8x1xf32>
    %5 = vector.broadcast %4 : vector<1x8x1xf32> to vector<1x8x128xf32>
    %6 = arith.subf %0, %5 : vector<1x8x128xf32>
    %7 = arith.mulf %6, %6 : vector<1x8x128xf32>
    %cst_3 = arith.constant dense<0.000000e+00> : vector<1x8xf32>
    %8 = vector.multi_reduction <add>, %7, %cst_3 [2] : vector<1x8x128xf32> to vector<1x8xf32>
    %9 = vector.shape_cast %8 : vector<1x8xf32> to vector<1x8x1xf32>
    %cst_4 = arith.constant 1.280000e+02 : f32
    %10 = vector.broadcast %cst_4 : f32 to vector<1x8x1xf32>
    %11 = arith.divf %9, %10 : vector<1x8x1xf32>
    %cst_5 = arith.constant 9.99999974E-6 : f32
    %12 = vector.broadcast %cst_5 : f32 to vector<1x8x1xf32>
    %13 = arith.addf %11, %12 : vector<1x8x1xf32>
    %14 = math.rsqrt %13 : vector<1x8x1xf32>
    %15 = vector.broadcast %14 : vector<1x8x1xf32> to vector<1x8x128xf32>
    %16 = arith.mulf %6, %15 : vector<1x8x128xf32>
    %c0_6 = arith.constant 0 : index
    %c0_7 = arith.constant 0 : index
    %c0_8 = arith.constant 0 : index
    %17 = vector.load %arg3[%c0_6, %c0_7, %c0_8] : memref<1x1x128xf32, #tpu.memory_space<vmem>>, vector<1x1x128xf32>
    %18 = vector.broadcast %17 : vector<1x1x128xf32> to vector<1x8x128xf32>
    %19 = arith.mulf %16, %18 : vector<1x8x128xf32>
    %c0_9 = arith.constant 0 : index
    %c0_10 = arith.constant 0 : index
    %c0_11 = arith.constant 0 : index
    %20 = vector.load %arg4[%c0_9, %c0_10, %c0_11] : memref<1x1x128xf32, #tpu.memory_space<vmem>>, vector<1x1x128xf32>
    %21 = vector.broadcast %20 : vector<1x1x128xf32> to vector<1x8x128xf32>
    %22 = arith.addf %19, %21 : vector<1x8x128xf32>
    %c0_12 = arith.constant 0 : index
    %c0_13 = arith.constant 0 : index
    %c0_14 = arith.constant 0 : index
    %23 = vector.load %arg5[%c0_12, %c0_13, %c0_14] : memref<1x8x128xf32, #tpu.memory_space<vmem>>, vector<1x8x128xf32>
    %24 = arith.addf %22, %23 : vector<1x8x128xf32>
    %c0_15 = arith.constant 0 : index
    %c0_16 = arith.constant 0 : index
    %c0_17 = arith.constant 0 : index
    %25 = vector.load %arg7[%c0_15, %c0_16, %c0_17] : memref<1x10x128xf32, #tpu.memory_space<vmem>>, vector<1x8x128xf32>
    tpu.vector_store %arg7[%c0_15, %c0_16, %c0_17], %24 {strides = array<i32>} : memref<1x10x128xf32, #tpu.memory_space<vmem>>, vector<1x8x128xf32>,
    %c0_18 = arith.constant 0 : index
    %c0_19 = arith.constant 0 : index
    %c0_20 = arith.constant 0 : index
    %26 = vector.load %arg6[%c0_18, %c0_19, %c0_20] : memref<1x2x128xf32, #tpu.memory_space<vmem>>, vector<1x2x128xf32>
    %c0_21 = arith.constant 0 : index
    %c8 = arith.constant 8 : index
    %c0_22 = arith.constant 0 : index
    %27 = vector.load %arg7[%c0_21, %c8, %c0_22] : memref<1x10x128xf32, #tpu.memory_space<vmem>>, vector<1x2x128xf32>
    tpu.vector_store %arg7[%c0_21, %c8, %c0_22], %26 {strides = array<i32>} : memref<1x10x128xf32, #tpu.memory_space<vmem>>, vector<1x2x128xf32>,
    return
  }
  func.func @transform_0(%arg0: i32, %arg1: i32) -> (i32, i32, i32) {
    %c0_i32 = arith.constant 0 : i32
    %c0_i32_0 = arith.constant 0 : i32
    return %arg1, %arg0, %c0_i32 : i32, i32, i32
  }
  func.func @transform_1(%arg0: i32, %arg1: i32) -> (i32, i32, i32) {
    %c0_i32 = arith.constant 0 : i32
    %c0_i32_0 = arith.constant 0 : i32
    %c0_i32_1 = arith.constant 0 : i32
    %c0_i32_2 = arith.constant 0 : i32
    return %c0_i32, %c0_i32_0, %c0_i32_1 : i32, i32, i32
  }
  func.func @transform_2(%arg0: i32, %arg1: i32) -> (i32, i32, i32) {
    %c0_i32 = arith.constant 0 : i32
    %c0_i32_0 = arith.constant 0 : i32
    %c0_i32_1 = arith.constant 0 : i32
    %c0_i32_2 = arith.constant 0 : i32
    return %c0_i32, %c0_i32_0, %c0_i32_1 : i32, i32, i32
  }
  func.func @transform_3(%arg0: i32, %arg1: i32) -> (i32, i32, i32) {
    %c0_i32 = arith.constant 0 : i32
    %c0_i32_0 = arith.constant 0 : i32
    %c0_i32_1 = arith.constant 0 : i32
    return %c0_i32, %arg0, %c0_i32_0 : i32, i32, i32
  }
  func.func @transform_4(%arg0: i32, %arg1: i32) -> (i32, i32, i32) {
    %c0_i32 = arith.constant 0 : i32
    %c0_i32_0 = arith.constant 0 : i32
    %c0_i32_1 = arith.constant 0 : i32
    %c0_i32_2 = arith.constant 0 : i32
    return %c0_i32, %c0_i32_0, %c0_i32_1 : i32, i32, i32
  }
  func.func @transform_5(%arg0: i32, %arg1: i32) -> (i32, i32, i32) {
    %c0_i32 = arith.constant 0 : i32
    %c0_i32_0 = arith.constant 0 : i32
    return %arg1, %arg0, %c0_i32 : i32, i32, i32
  }
}

</mosaic_0001>

<llo_original>
// kernel: tpu_custom_call.1
$region0: #{tpu_custom_call.1}
  #allocation0 [shape = 'u32[]', space=smem, size = 0x4, offset = 0x4, fixed_abs, tag = 'smem constant byte address 0x4 - core index']
  #allocation1 [shape = 'u32[144,128]{1,0:T(1,128)}', space=vmem, size = 0x12000, scoped, tag = 'internal scratch']
  %s0 = inlined_call_operand.hbm [shape: f32[2,8,128], index: 0, kind: input, shape index: {}]
  %s1 = inlined_call_operand.vmem [shape: f32[1,1,128], index: 1, kind: input, shape index: {}]
  %s2 = inlined_call_operand.hbm [shape: f32[1,1,128], index: 2, kind: input, shape index: {}]
  %s3 = inlined_call_operand.vmem [shape: f32[1,8,128], index: 3, kind: input, shape index: {}]
  %s4 = inlined_call_operand.vmem [shape: f32[1,2,128], index: 4, kind: input, shape index: {}]
  %s5 = inlined_call_operand.vmem [shape: f32[2,10,128], index: 5, kind: output, shape index: {}]
  %s6 = sld [smem:[#allocation0]]
  $region61: #{tpu_custom_call.1} parent=0
    _
  %s8 = ssub.s32 1, %s6
  %s9 = scalar_select 0, %s8, %s6
  $region1: #{tpu_custom_call.1} parent=0
    #allocation2 [shape = 'u8[8192]{0}', space=vmem, size = 0x2000, scoped, tag = 'input window, operand 0']
    #allocation3 [shape = 's32[2]{0}', space=sflag, size = 0x8, scoped, tag = 'scoped memory for tpu_custom_call.1']
    #allocation4 [shape = 'u8[512]{0}', space=vmem, size = 0x400, scoped, tag = 'input window, operand 2, single buffered']
    #allocation5 [shape = 's32[1]{0}', space=sflag, size = 0x4, scoped, tag = 'scoped memory for tpu_custom_call.1']
    %10 = vsyncpa [#allocation3], 0
    %s11 = scalar_lea.sflag [#allocation3], 1
    %12 = vsyncpa %s11, 0
    %13 = vsyncpa [#allocation5], 0
    loop: start=0, step=1, limit=4
    $region2: #{tpu_custom_call.1} parent=1 // loop_pre_header
      _
    $region3: #{tpu_custom_call.1} parent=1 // loop_header
      %s15 = sphi 0, %s19
      %p16 = scmp.ge.s32.totalorder %s15, 4
      %s22 = sphi 0, %s34
      %s23 = sphi 0, %s30
      %s24 = sphi 0, %s22
      %s25 = sphi 0, %s23
      %s26 = sphi 0, %s24
      %s27 = sphi 0, %s25
      %s39 = sphi 0, %s41
      %s42 = sphi 0, %s39
      %s43 = sphi 0, %s42
      %s59 = sphi 0, %s43
      %s63 = sphi 0, %s63
      %s65 = sphi 0, %s63
      %s66 = sphi 0, %s65
      %s80 = sphi 0, %s66
      %s84 = sphi 0, %s84
      %s86 = sphi 0, %s84
      %s87 = sphi 0, %s86
      %s101 = sphi 0, %s87
      %s107 = sphi 0, %s109
      %s110 = sphi 0, %s107
      %s111 = sphi 0, %s110
      %s127 = sphi 0, %s111
      %s131 = sphi 0, %s131
      %s133 = sphi 0, %s131
      %s134 = sphi 0, %s133
      %s148 = sphi 0, %s134
      %s156 = sphi 0, %s158
      %s159 = sphi 0, %s156
      %s160 = sphi 0, %s159
      %s176 = sphi 0, %s160
    $region4: #{tpu_custom_call.1} parent=1 // loop_header_branch
      %18 = sbr.rel (%p16) target = $region8
    $region5: #{tpu_custom_call.1} parent=1 // loop_body
      %s20 = ssub.s32 %s15, 1
      %s21 = ssub.s32 %s15, 2
      %s28 = sadd.s32 1, %s23
      %p29 = scmp.ge.s32.totalorder %s28, 2
      %s30 = scalar_select %p29, 0, %s28
      %s31 = sadd.s32 1, %s22
      %s32 = scalar_select %p29, %s31, %s22
      %p33 = scmp.ge.s32.totalorder %s32, 1
      %s34 = scalar_select %p33, 0, %s32
      %s35 = ssub.s32 %s23, %s30
      %s36 = ssub.s32 %s22, %s34
      %s37 = sor.u32 %s35, %s36
      %p38 = scmp.eq.s32.totalorder %s37, 0
      %s40 = sadd.s32 %s39, 1
      %s41 = scalar_select %p38, %s39, %s40
      %p44 = pneg %p38
      %p45 = scmp.eq.s32.totalorder %s15, 1
      %p46 = por %p44, %p45
      %p47 = scmp.ne.s32.totalorder %s39, %s42
      %p48 = scmp.eq.s32.totalorder %s15, 0
      %p49 = por %p47, %p48
      %p50 = scmp.ne.s32.totalorder %s39, %s42
      %p51 = scmp.eq.s32.totalorder %s20, 1
      %p52 = por %p50, %p51
      %p53 = scmp.ne.s32.totalorder %s42, %s43
      %p54 = scmp.eq.s32.totalorder %s20, 0
      %p55 = por %p53, %p54
      %p56 = scmp.ne.s32.totalorder %s42, %s43
      %p57 = scmp.eq.s32.totalorder %s21, 1
      %p58 = por %p56, %p57
      %p60 = scmp.ne.s32.totalorder %s43, %s59
      %p61 = scmp.eq.s32.totalorder %s21, 0
      %p62 = por %p60, %p61
      %s64 = sadd.s32 %s63, 1
      %p67 = scmp.eq.s32.totalorder %s15, 1
      %p68 = scmp.ne.s32.totalorder %s63, %s65
      %p69 = scmp.eq.s32.totalorder %s15, 0
      %p70 = por %p68, %p69
      %p71 = scmp.ne.s32.totalorder %s63, %s65
      %p72 = scmp.eq.s32.totalorder %s20, 1
      %p73 = por %p71, %p72
      %p74 = scmp.ne.s32.totalorder %s65, %s66
      %p75 = scmp.eq.s32.totalorder %s20, 0
      %p76 = por %p74, %p75
      %p77 = scmp.ne.s32.totalorder %s65, %s66
      %p78 = scmp.eq.s32.totalorder %s21, 1
      %p79 = por %p77, %p78
      %p81 = scmp.ne.s32.totalorder %s66, %s80
      %p82 = scmp.eq.s32.totalorder %s21, 0
      %p83 = por %p81, %p82
      %s85 = sadd.s32 %s84, 1
      %p88 = scmp.eq.s32.totalorder %s15, 1
      %p89 = scmp.ne.s32.totalorder %s84, %s86
      %p90 = scmp.eq.s32.totalorder %s15, 0
      %p91 = por %p89, %p90
      %p92 = scmp.ne.s32.totalorder %s84, %s86
      %p93 = scmp.eq.s32.totalorder %s20, 1
      %p94 = por %p92, %p93
      %p95 = scmp.ne.s32.totalorder %s86, %s87
      %p96 = scmp.eq.s32.totalorder %s20, 0
      %p97 = por %p95, %p96
      %p98 = scmp.ne.s32.totalorder %s86, %s87
      %p99 = scmp.eq.s32.totalorder %s21, 1
      %p100 = por %p98, %p99
      %p102 = scmp.ne.s32.totalorder %s87, %s101
      %p103 = scmp.eq.s32.totalorder %s21, 0
      %p104 = por %p102, %p103
      %s105 = ssub.s32 %s22, %s34
      %p106 = scmp.eq.s32.totalorder %s105, 0
      %s108 = sadd.s32 %s107, 1
      %s109 = scalar_select %p106, %s107, %s108
      %p112 = pneg %p106
      %p113 = scmp.eq.s32.totalorder %s15, 1
      %p114 = por %p112, %p113
      %p115 = scmp.ne.s32.totalorder %s107, %s110
      %p116 = scmp.eq.s32.totalorder %s15, 0
      %p117 = por %p115, %p116
      %p118 = scmp.ne.s32.totalorder %s107, %s110
      %p119 = scmp.eq.s32.totalorder %s20, 1
      %p120 = por %p118, %p119
      %p121 = scmp.ne.s32.totalorder %s110, %s111
      %p122 = scmp.eq.s32.totalorder %s20, 0
      %p123 = por %p121, %p122
      %p124 = scmp.ne.s32.totalorder %s110, %s111
      %p125 = scmp.eq.s32.totalorder %s21, 1
      %p126 = por %p124, %p125
      %p128 = scmp.ne.s32.totalorder %s111, %s127
      %p129 = scmp.eq.s32.totalorder %s21, 0
      %p130 = por %p128, %p129
      %s132 = sadd.s32 %s131, 1
      %p135 = scmp.eq.s32.totalorder %s15, 1
      %p136 = scmp.ne.s32.totalorder %s131, %s133
      %p137 = scmp.eq.s32.totalorder %s15, 0
      %p138 = por %p136, %p137
      %p139 = scmp.ne.s32.totalorder %s131, %s133
      %p140 = scmp.eq.s32.totalorder %s20, 1
      %p141 = por %p139, %p140
      %p142 = scmp.ne.s32.totalorder %s133, %s134
      %p143 = scmp.eq.s32.totalorder %s20, 0
      %p144 = por %p142, %p143
      %p145 = scmp.ne.s32.totalorder %s133, %s134
      %p146 = scmp.eq.s32.totalorder %s21, 1
      %p147 = por %p145, %p146
      %p149 = scmp.ne.s32.totalorder %s134, %s148
      %p150 = scmp.eq.s32.totalorder %s21, 0
      %p151 = por %p149, %p150
      %s152 = ssub.s32 %s23, %s30
      %s153 = ssub.s32 %s22, %s34
      %s154 = sor.u32 %s152, %s153
      %p155 = scmp.eq.s32.totalorder %s154, 0
      %s157 = sadd.s32 %s156, 1
      %s158 = scalar_select %p155, %s156, %s157
      %p161 = pneg %p155
      %p162 = scmp.eq.s32.totalorder %s15, 1
      %p163 = por %p161, %p162
      %p164 = scmp.ne.s32.totalorder %s156, %s159
      %p165 = scmp.eq.s32.totalorder %s15, 0
      %p166 = por %p164, %p165
      %p167 = scmp.ne.s32.totalorder %s156, %s159
      %p168 = scmp.eq.s32.totalorder %s20, 1
      %p169 = por %p167, %p168
      %p170 = scmp.ne.s32.totalorder %s159, %s160
      %p171 = scmp.eq.s32.totalorder %s20, 0
      %p172 = por %p170, %p171
      %p173 = scmp.ne.s32.totalorder %s159, %s160
      %p174 = scmp.eq.s32.totalorder %s21, 1
      %p175 = por %p173, %p174
      %p177 = scmp.ne.s32.totalorder %s160, %s176
      %p178 = scmp.eq.s32.totalorder %s21, 0
      %p179 = por %p177, %p178
      %p180 = scmp.le.s32.totalorder 1, %s15
      %p181 = scmp.lt.s32.totalorder %s15, 3
      %p182 = pnand %p180, %p181
      %p183 = pneg %p182
      // Predicated region
      $region9: #{tpu_custom_call.1} parent=5 // pred_check
        _
      $region10: #{tpu_custom_call.1} parent=5 // pred_check_branch
        %185 = sbr.rel (%p182) target = $region12
      $region11: #{tpu_custom_call.1} parent=5 // pred_region
        %s186 = ssub.s32 %s15, 1
        // Predicated region
        $region13: #{tpu_custom_call.1} parent=11 // pred_check
          %p187 = pneg %p76
        $region14: #{tpu_custom_call.1} parent=11 // pred_check_branch
          %189 = sbr.rel (%p187) target = $region16
        $region15: #{tpu_custom_call.1} parent=11 // pred_region
          _
        $region16: #{tpu_custom_call.1} parent=11 // pred_fallthru
          _
        // Predicated region
        $region17: #{tpu_custom_call.1} parent=11 // pred_check
          %p190 = pneg %p97
        $region18: #{tpu_custom_call.1} parent=11 // pred_check_branch
          %192 = sbr.rel (%p190) target = $region20
        $region19: #{tpu_custom_call.1} parent=11 // pred_region
          %s194 = ssub.s32 16, 16
          %195 = vsyncadd [#allocation5], %s194
          %s197 = sshll.u32 [#allocation4], 4
          %s198 = int_to_ptr.vmem [resolvable:$true] %s197
          %200 = dma.hbm_to_vmem [thread:$0]  %s2, 16, %s198, [#allocation5]
        $region20: #{tpu_custom_call.1} parent=11 // pred_fallthru
          _
        // Predicated region
        $region21: #{tpu_custom_call.1} parent=11 // pred_check
          %p201 = pneg %p123
        $region22: #{tpu_custom_call.1} parent=11 // pred_check_branch
          %203 = sbr.rel (%p201) target = $region24
        $region23: #{tpu_custom_call.1} parent=11 // pred_region
          %p204 = scmp.lt.s32.totalorder %s24, 0
          %s205 = scalar_select %p204, %s24, 0
          %s206 = smul.addr %s205, 8
          %s207 = scalar_lea.vmem %s3, %s206
        $region24: #{tpu_custom_call.1} parent=11 // pred_fallthru
          _
        // Predicated region
        $region25: #{tpu_custom_call.1} parent=11 // pred_check
          %p208 = pneg %p144
        $region26: #{tpu_custom_call.1} parent=11 // pred_check_branch
          %210 = sbr.rel (%p208) target = $region28
        $region27: #{tpu_custom_call.1} parent=11 // pred_region
          _
        $region28: #{tpu_custom_call.1} parent=11 // pred_fallthru
          _
      $region12: #{tpu_custom_call.1} parent=5 // pred_fallthru
        _
      %p211 = scmp.lt.s32.totalorder %s15, 2
      // Predicated region
      $region29: #{tpu_custom_call.1} parent=5 // pred_check
        %p212 = pneg %p211
      $region30: #{tpu_custom_call.1} parent=5 // pred_check_branch
        %214 = sbr.rel (%p212) target = $region32
      $region31: #{tpu_custom_call.1} parent=5 // pred_region
        // Predicated region
        $region33: #{tpu_custom_call.1} parent=31 // pred_check
          %p215 = pneg %p49
        $region34: #{tpu_custom_call.1} parent=31 // pred_check_branch
          %217 = sbr.rel (%p215) target = $region36
        $region35: #{tpu_custom_call.1} parent=31 // pred_region
          %s218 = sand.u32 %s39, 1
          %s219 = scalar_lea.sflag [#allocation3], %s218
          %s220 = sand.u32 %s39, 1
          %s221 = smul.addr %s220, 8
          %s222 = scalar_lea.vmem [#allocation2], %s221
          %s224 = ssub.s32 128, 128
          %225 = vsyncadd %s219, %s224
          %s226 = sadd.s32 %s22, %s23
          %s227 = smul.addr %s226, 128
          %s228 = scalar_lea.hbm %s0, %s227
          %s230 = sshll.u32 %s222, 4
          %s231 = int_to_ptr.vmem [resolvable:$true] %s230
          %233 = dma.hbm_to_vmem [thread:$0]  %s228, 128, %s231, %s219
        $region36: #{tpu_custom_call.1} parent=31 // pred_fallthru
          _
      $region32: #{tpu_custom_call.1} parent=5 // pred_fallthru
        _
      %p234 = scmp.le.s32.totalorder 1, %s15
      %p235 = scmp.lt.s32.totalorder %s15, 3
      %p236 = pnand %p234, %p235
      %p237 = pneg %p236
      // Predicated region
      $region37: #{tpu_custom_call.1} parent=5 // pred_check
        _
      $region38: #{tpu_custom_call.1} parent=5 // pred_check_branch
        %239 = sbr.rel (%p236) target = $region40
      $region39: #{tpu_custom_call.1} parent=5 // pred_region
        %s240 = ssub.s32 %s15, 1
        %s241 = sand.u32 %s42, 1
        %s242 = scalar_lea.sflag [#allocation3], %s241
        %s243 = sand.u32 %s42, 1
        %s244 = smul.addr %s243, 8
        %s245 = scalar_lea.vmem [#allocation2], %s244
        // Predicated region
        $region41: #{tpu_custom_call.1} parent=39 // pred_check
          %p246 = pneg %p55
        $region42: #{tpu_custom_call.1} parent=39 // pred_check_branch
          %248 = sbr.rel (%p246) target = $region44
        $region43: #{tpu_custom_call.1} parent=39 // pred_region
          %249 = dma.done %s242, 128
        $region44: #{tpu_custom_call.1} parent=39 // pred_fallthru
          _
        // Predicated region
        $region45: #{tpu_custom_call.1} parent=39 // pred_check
          %p250 = pneg %p97
        $region46: #{tpu_custom_call.1} parent=39 // pred_check_branch
          %252 = sbr.rel (%p250) target = $region48
        $region47: #{tpu_custom_call.1} parent=39 // pred_region
          %253 = dma.done [#allocation5], 16
        $region48: #{tpu_custom_call.1} parent=39 // pred_fallthru
          _
        %s254 = sand.u32 %s42, 1
        %s255 = scalar_lea.sflag [#allocation3], %s254
        %s256 = sand.u32 %s42, 1
        %s257 = smul.addr %s256, 8
        %s258 = scalar_lea.vmem [#allocation2], %s257
        %p259 = pneg %p55
        %p260 = pneg %p52
        %p261 = pneg %p76
        %p262 = pneg %p73
        %p263 = pneg %p97
        %p264 = pneg %p94
        %p265 = scmp.lt.s32.totalorder %s24, 0
        %s266 = scalar_select %p265, %s24, 0
        %s267 = smul.addr %s266, 8
        %s268 = scalar_lea.vmem %s3, %s267
        %p269 = pneg %p123
        %p270 = pneg %p120
        %p271 = pneg %p144
        %p272 = pneg %p141
        %p273 = pneg %p172
        %p274 = pneg %p169
        %s275 = smul.u32 2, %s24
        %p276 = scmp.lt.s32.totalorder %s25, 1
        %s277 = scalar_select %p276, %s25, 1
        %p278 = scmp.lt.s32.totalorder %s275, 1
        %s279 = scalar_select %p278, %s275, 1
        %s280 = smul.addr %s277, 2
        %s281 = sadd.s32 %s279, %s280
        %s282 = smul.addr %s281, 8
        %s283 = scalar_lea.vmem %s5, %s282
        %p284 = scmp.lt.s32.totalorder %s24, 0
        %s285 = scalar_select %p284, %s24, 0
        %s286 = smul.addr %s285, 8
        %s287 = scalar_lea.vmem %s3, %s286
        %s288 = smul.u32 2, %s24
        %p289 = scmp.lt.s32.totalorder %s25, 1
        %s290 = scalar_select %p289, %s25, 1
        %p291 = scmp.lt.s32.totalorder %s288, 1
        %s292 = scalar_select %p291, %s288, 1
        %s293 = smul.addr %s290, 2
        %s294 = sadd.s32 %s292, %s293
        %s295 = smul.addr %s294, 8
        %s296 = scalar_lea.vmem %s5, %s295
        %s297 = smul.u32 2, %s24
        %v298 = vld [vmem:[%s245] sm:$0xff]
        %299 = vadd.xlane.f32.xlu0 %v298
        %v300 = vpop.xlane.xlu0 %299
        %v301 = vrcp.pop 128.0
        %v302 = vmul.f32 %v300, %v301
        %v303 = vsub.f32 %v298, %v302
        %v304 = vmul.f32 %v303, %v303
        %305 = vadd.xlane.f32.xlu0 %v304
        %v306 = vpop.xlane.xlu0 %305
        %v307 = vmul.f32 %v306, %v301
        %v308 = vadd.f32 %v307, 1e-05
        %v309 = vrsqrt.pop %v308
        %v310 = vmul.f32 %v303, %v309
        %v311 = vld [vmem:[%s1] sm:$0x1]
        %v313 = vlaneseq
        %v314 = vshrl.u32 %v313, 7
        %v315 = vsub.s32 0, %v314
        %v316 = vrot.slane %v311, %v315
        %v318 = vmul.f32 %v310, %v316
        %v319 = vld [vmem:[#allocation4] sm:$0x1]
        %v321 = vlaneseq
        %v322 = vshrl.u32 %v321, 7
        %v323 = vsub.s32 0, %v322
        %v324 = vrot.slane %v319, %v323
        %v326 = vadd.f32 %v318, %v324
        %v327 = vld [vmem:[%s287] sm:$0xff]
        %v328 = vadd.f32 %v326, %v327
        %329 = vst [vmem:[%s296] sm:$0xff] %v328
        %v330 = vld [vmem:[%s4] sm:$0x3]
        %331 = vst [vmem:[%s296 + $0x8] sm:$0x3] %v330
        %s332 = smul.u32 2, %s24
        %p333 = scmp.lt.s32.totalorder %s25, 1
        %s334 = scalar_select %p333, %s25, 1
        %p335 = scmp.lt.s32.totalorder %s332, 1
        %s336 = scalar_select %p335, %s332, 1
        %s337 = smul.addr %s334, 2
        %s338 = sadd.s32 %s336, %s337
        %s339 = smul.addr %s338, 8
        %s340 = scalar_lea.vmem %s5, %s339
        // Predicated region
        $region49: #{tpu_custom_call.1} parent=39 // pred_check
          %p341 = pneg %p169
        $region50: #{tpu_custom_call.1} parent=39 // pred_check_branch
          %343 = sbr.rel (%p341) target = $region52
        $region51: #{tpu_custom_call.1} parent=39 // pred_region
          %s344 = smul.u32 2, %s24
        $region52: #{tpu_custom_call.1} parent=39 // pred_fallthru
          _
      $region40: #{tpu_custom_call.1} parent=5 // pred_fallthru
        _
      %p345 = scmp.le.s32.totalorder 2, %s15
      // Predicated region
      $region53: #{tpu_custom_call.1} parent=5 // pred_check
        %p346 = pneg %p345
      $region54: #{tpu_custom_call.1} parent=5 // pred_check_branch
        %348 = sbr.rel (%p346) target = $region56
      $region55: #{tpu_custom_call.1} parent=5 // pred_region
        %s349 = ssub.s32 %s15, 2
        // Predicated region
        $region57: #{tpu_custom_call.1} parent=55 // pred_check
          %p350 = pneg %p175
        $region58: #{tpu_custom_call.1} parent=55 // pred_check_branch
          %352 = sbr.rel (%p350) target = $region60
        $region59: #{tpu_custom_call.1} parent=55 // pred_region
          %s353 = smul.u32 2, %s26
          %p354 = scmp.lt.s32.totalorder %s27, 1
          %s355 = scalar_select %p354, %s27, 1
          %p356 = scmp.lt.s32.totalorder %s353, 1
          %s357 = scalar_select %p356, %s353, 1
          %s358 = smul.addr %s355, 2
          %s359 = sadd.s32 %s357, %s358
          %s360 = smul.addr %s359, 8
          %s361 = scalar_lea.vmem %s5, %s360
        $region60: #{tpu_custom_call.1} parent=55 // pred_fallthru
          _
      $region56: #{tpu_custom_call.1} parent=5 // pred_fallthru
        _
    $region6: #{tpu_custom_call.1} parent=1 // loop_footer
      %s19 = sadd.s32 1, %s15
    $region7: #{tpu_custom_call.1} parent=1 // loop_footer_branch
      %14 = sbr.rel target = $region3
    $region8: #{tpu_custom_call.1} parent=1 // loop_exit
      _
    %362 = vsyncpa [#allocation3], 1
    %s363 = scalar_lea.sflag [#allocation3], 1
    %364 = vsyncpa %s363, 1
    %365 = vsyncpa [#allocation5], 1

</llo_original>
